<compile_context>
chip_gen: v6e
topology: v6e:2x2x1
jax: 0.10.0
libtpu: 0.0.40
codegen_flags: <defaults>
</compile_context>

<pallas_src>
import jax
import jax.numpy as jnp
from jax.experimental import pallas as pl
from jax.experimental.pallas import tpu as pltpu


def _round_up(x, m):
    return (x + m - 1) // m * m


def _ffn_kernel(x_ref, w1a_ref, w1b_ref, b1a_ref, b1b_ref, w2_ref, b2_ref,
                o_ref, acc_ref):
    """One (row-tile, hidden-tile) step of the SwiGLU FFN.

    x1   = x @ W1a_tile + b1a_tile          (bf16 MXU operands, f32 result)
    x2   = x @ W1b_tile + b1b_tile
    acc += (silu(x1) * x2) @ W2_tile        (f32 VMEM accumulator)
    last hidden tile: out = acc + b2
    """
    hid = pl.program_id(1)

    @pl.when(hid == 0)
    def _init():
        acc_ref[...] = jnp.zeros_like(acc_ref)

    x = x_ref[...]                                            # (tm, dim_p)
    x1 = jnp.dot(x, w1a_ref[...], preferred_element_type=jnp.float32) + b1a_ref[...]
    x2 = jnp.dot(x, w1b_ref[...], preferred_element_type=jnp.float32) + b1b_ref[...]
    gated = (x1 * jax.nn.sigmoid(x1)) * x2                    # SiLU gate in f32
    acc_ref[...] += jnp.dot(gated.astype(w2_ref.dtype), w2_ref[...],
                            preferred_element_type=jnp.float32)

    @pl.when(hid == pl.num_programs(1) - 1)
    def _finalize():
        # TODO(synk): training-mode dropout would mask here via pltpu.prng_seed +
        # pltpu.prng_random_bits; eval mode is identity.
        o_ref[...] = (acc_ref[...] + b2_ref[...]).astype(o_ref.dtype)


def prepare_ffn_params(w1, b1, w2, b2, *, compute_dtype=jnp.bfloat16):
    """Pad + split + cast the FFN weights ONCE (weight-load time, not per call).

    w1: [dim, 2*hidden] (PyTorch Linear weight transposed to [in, out])
    b1: [2*hidden]      w2: [hidden, dim]      b2: [dim]
    """
    dim, two_hidden = w1.shape
    hidden = two_hidden // 2
    assert w2.shape == (hidden, dim)

    dim_p = _round_up(dim, 128)
    hid_p = _round_up(hidden, 128)

    w1a = jnp.pad(w1[:, :hidden], ((0, dim_p - dim), (0, hid_p - hidden))).astype(compute_dtype)
    w1b = jnp.pad(w1[:, hidden:], ((0, dim_p - dim), (0, hid_p - hidden))).astype(compute_dtype)
    b1a = jnp.pad(b1[:hidden], (0, hid_p - hidden)).reshape(1, hid_p).astype(jnp.float32)
    b1b = jnp.pad(b1[hidden:], (0, hid_p - hidden)).reshape(1, hid_p).astype(jnp.float32)
    w2p = jnp.pad(w2, ((0, hid_p - hidden), (0, dim_p - dim))).astype(compute_dtype)
    b2p = jnp.pad(b2, (0, dim_p - dim)).reshape(1, dim_p).astype(jnp.float32)

    return dict(dim=dim, hidden=hidden, dim_p=dim_p, hid_p=hid_p,
                w1a=w1a, w1b=w1b, b1a=b1a, b1b=b1b, w2=w2p, b2=b2p)


def feed_forward(x, params, *, tm=None, th=None):
    """SwiGLU FFN forward.  x: [..., dim]; params from prepare_ffn_params."""
    dim = params["dim"]
    dim_p, hid_p = params["dim_p"], params["hid_p"]
    w1a, w1b = params["w1a"], params["w1b"]
    b1a, b1b = params["b1a"], params["b1b"]
    w2p, b2p = params["w2"], params["b2"]
    compute_dtype = w1a.dtype
    itm = jnp.dtype(compute_dtype).itemsize
    out_itm = jnp.dtype(x.dtype).itemsize

    orig_shape = x.shape
    xm = x.reshape(-1, dim)
    M = xm.shape[0]

    # ---- generation-aware VMEM budget --------------------------------------
    try:
        info = pltpu.get_tpu_info()
        vmem_cap = int(getattr(info, "vmem_capacity_bytes", 64 << 20))
    except Exception:
        vmem_cap = 64 << 20                      # conservative (v7x per-TC)
    budget = int(vmem_cap * 0.75)

    # ---- row tile (lane/sublane friendly, keeps both v7x TCs busy) ---------
    if tm is None:
        tm = 512
    if M >= 128:
        tm_eff = min(_round_up(tm, 128), _round_up(M, 128))
    else:
        tm_eff = max(8, _round_up(M, 16))
    if -(-M // tm_eff) == 1 and tm_eff >= 256:   # single row tile -> split in two
        tm_eff = max(128, _round_up(-(-M // 2), 128))

    def footprint(tm_, th_):
        x_b = 2 * tm_ * dim_p * itm                      # x tile, double buffered
        w_b = 2 * 3 * dim_p * th_ * itm                  # w1a + w1b + w2 tiles
        bias_b = 2 * (2 * th_ + dim_p) * 4               # b1a + b1b + b2
        out_b = 2 * tm_ * dim_p * out_itm                # output tile
        acc_b = tm_ * dim_p * 4                          # f32 accumulator scratch
        return x_b + w_b + bias_b + out_b + acc_b

    # ---- hidden tile: prefer full weight residency (n_h = 1) when it fits --
    if th is None:
        th_eff = 128
        for k in range(hid_p // 128, 0, -1):
            cand = 128 * k
            if hid_p % cand == 0 and footprint(tm_eff, cand) <= budget:
                th_eff = cand
                break
    else:
        th_eff = min(_round_up(th, 128), hid_p)
        while hid_p % th_eff != 0:
            th_eff -= 128
    while footprint(tm_eff, th_eff) > budget and tm_eff > 128:
        tm_eff = max(128, tm_eff // 2)

    n_h = hid_p // th_eff
    Mp = _round_up(M, tm_eff)
    x_p = jnp.pad(xm, ((0, Mp - M), (0, dim_p - dim))).astype(compute_dtype)

    grid = (Mp // tm_eff, n_h)
    vmem_limit = min(max(int(footprint(tm_eff, th_eff) * 1.25) + (4 << 20), 32 << 20),
                     int(vmem_cap * 0.9))

    out = pl.pallas_call(
        _ffn_kernel,
        out_shape=jax.ShapeDtypeStruct((Mp, dim_p), x.dtype),
        grid_spec=pltpu.PrefetchScalarGridSpec(
            num_scalar_prefetch=0,
            grid=grid,
            in_specs=[
                pl.BlockSpec((tm_eff, dim_p), lambda i, h: (i, 0)),   # x row tile
                pl.BlockSpec((dim_p, th_eff), lambda i, h: (0, h)),   # W1 gate half
                pl.BlockSpec((dim_p, th_eff), lambda i, h: (0, h)),   # W1 linear half
                pl.BlockSpec((1, th_eff), lambda i, h: (0, h)),       # b1 gate half
                pl.BlockSpec((1, th_eff), lambda i, h: (0, h)),       # b1 linear half
                pl.BlockSpec((th_eff, dim_p), lambda i, h: (h, 0)),   # W2 tile
                pl.BlockSpec((1, dim_p), lambda i, h: (0, 0)),        # b2
            ],
            out_specs=pl.BlockSpec((tm_eff, dim_p), lambda i, h: (i, 0)),
            scratch_shapes=[pltpu.VMEM((tm_eff, dim_p), jnp.float32)],
        ),
        compiler_params=pltpu.CompilerParams(
            dimension_semantics=("parallel", "arbitrary"),
            vmem_limit_bytes=vmem_limit,
        ),
    )(x_p, w1a, w1b, b1a, b1b, w2p, b2p)

    return out[:M, :dim].reshape(orig_shape)


def _reference(x, w1, b1, w2, b2):
    h = x @ w1 + b1
    hidden = w2.shape[0]
    x1, x2 = h[..., :hidden], h[..., hidden:]
    return (jax.nn.silu(x1) * x2) @ w2 + b2


if __name__ == "__main__":
    # Small shapes that still exercise row padding, feature padding and the
    # hidden-tile grid axis handling.
    batch, seq, dim, hidden = 2, 40, 96, 160
    key = jax.random.PRNGKey(0)
    kx, k1, kb1, k2, kb2 = jax.random.split(key, 5)

    x = jax.random.normal(kx, (batch, seq, dim), dtype=jnp.float32)
    # Deterministic param init (uniform, Linear-like scale), stored as [in, out].
    w1 = jax.random.uniform(k1, (dim, 2 * hidden), jnp.float32,
                            minval=-1.0, maxval=1.0) / jnp.sqrt(dim)
    b1 = jax.random.uniform(kb1, (2 * hidden,), jnp.float32,
                            minval=-1.0, maxval=1.0) / jnp.sqrt(dim)
    w2 = jax.random.uniform(k2, (hidden, dim), jnp.float32,
                            minval=-1.0, maxval=1.0) / jnp.sqrt(hidden)
    b2 = jax.random.uniform(kb2, (dim,), jnp.float32,
                            minval=-1.0, maxval=1.0) / jnp.sqrt(hidden)

    params = prepare_ffn_params(w1, b1, w2, b2, compute_dtype=jnp.bfloat16)
    out = feed_forward(x, params)
    out = jax.block_until_ready(out)

    ref = _reference(x, w1, b1, w2, b2)
    assert out.shape == (batch, seq, dim)
    max_err = float(jnp.max(jnp.abs(out - ref)))
    # bf16 MXU operands with f32 accumulation: tolerance reflects bf16 rounding.
    assert max_err < 5e-2, f"mismatch vs reference: max |err| = {max_err}"
    print("KERNEL_OK")
</pallas_src>

<mosaic_0001>
module attributes {stable_mosaic.version = 11 : i64} {
  func.func @_ffn_kernel(%arg0: i32, %arg1: i32, %arg2: memref<80x128xbf16, #tpu.memory_space<vmem>>, %arg3: memref<128x256xbf16, #tpu.memory_space<vmem>>, %arg4: memref<128x256xbf16, #tpu.memory_space<vmem>>, %arg5: memref<1x256xf32, #tpu.memory_space<vmem>>, %arg6: memref<1x256xf32, #tpu.memory_space<vmem>>, %arg7: memref<256x128xbf16, #tpu.memory_space<vmem>>, %arg8: memref<1x128xf32, #tpu.memory_space<vmem>>, %arg9: memref<80x128xf32, #tpu.memory_space<vmem>>, %arg10: memref<80x128xf32, #tpu.memory_space<vmem>>) attributes {dimension_semantics = [#tpu.dimension_semantics<parallel>, #tpu.dimension_semantics<arbitrary>], iteration_bounds = array<i64: 1, 1>, scalar_prefetch = 0 : i64, scratch_operands = 1 : i64, tpu.core_type = #tpu.core_type<tc>, window_params = [{transform_indices = @transform_0, window_bounds = array<i64: 80, 128>}, {transform_indices = @transform_1, window_bounds = array<i64: 128, 256>}, {transform_indices = @transform_2, window_bounds = array<i64: 128, 256>}, {transform_indices = @transform_3, window_bounds = array<i64: 1, 256>}, {transform_indices = @transform_4, window_bounds = array<i64: 1, 256>}, {transform_indices = @transform_5, window_bounds = array<i64: 256, 128>}, {pipeline_mode = #tpu.pipeline_mode<synchronous>, transform_indices = @transform_6, window_bounds = array<i64: 1, 128>}, {transform_indices = @transform_7, window_bounds = array<i64: 80, 128>}]} {
    %c0_i32 = arith.constant 0 : i32
    %0 = arith.cmpi eq, %arg1, %c0_i32 : i32
    %1 = arith.extui %0 : i1 to i32
    %c0_i32_0 = arith.constant 0 : i32
    %2 = arith.cmpi ne, %1, %c0_i32_0 : i32
    scf.if %2 {
      %cst_21 = arith.constant 0.000000e+00 : f32
      %30 = vector.broadcast %cst_21 : f32 to vector<80x128xf32>
      %c0_22 = arith.constant 0 : index
      %c0_23 = arith.constant 0 : index
      %31 = vector.load %arg10[%c0_22, %c0_23] : memref<80x128xf32, #tpu.memory_space<vmem>>, vector<80x128xf32>
      tpu.vector_store %arg10[%c0_22, %c0_23], %30 {strides = array<i32>} : memref<80x128xf32, #tpu.memory_space<vmem>>, vector<80x128xf32>,
    } else {
    }
    %c0 = arith.constant 0 : index
    %c0_1 = arith.constant 0 : index
    %3 = vector.load %arg2[%c0, %c0_1] : memref<80x128xbf16, #tpu.memory_space<vmem>>, vector<80x128xbf16>
    %c0_2 = arith.constant 0 : index
    %c0_3 = arith.constant 0 : index
    %4 = vector.load %arg3[%c0_2, %c0_3] : memref<128x256xbf16, #tpu.memory_space<vmem>>, vector<128x256xbf16>
    %cst = arith.constant dense<0.000000e+00> : vector<80x256xf32>
    %5 = tpu.matmul %3, %4, %cst {dimension_numbers = #tpu.dot_dimension_numbers<[1], [0], [0], [1], [0, 0, 1, 1], [], []>} : vector<80x128xbf16>, vector<128x256xbf16>, vector<80x256xf32> -> vector<80x256xf32>
    %c0_4 = arith.constant 0 : index
    %c0_5 = arith.constant 0 : index
    %6 = vector.load %arg5[%c0_4, %c0_5] : memref<1x256xf32, #tpu.memory_space<vmem>>, vector<1x256xf32>
    %7 = vector.broadcast %6 : vector<1x256xf32> to vector<80x256xf32>
    %8 = arith.addf %5, %7 : vector<80x256xf32>
    %c0_6 = arith.constant 0 : index
    %c0_7 = arith.constant 0 : index
    %9 = vector.load %arg4[%c0_6, %c0_7] : memref<128x256xbf16, #tpu.memory_space<vmem>>, vector<128x256xbf16>
    %cst_8 = arith.constant dense<0.000000e+00> : vector<80x256xf32>
    %10 = tpu.matmul %3, %9, %cst_8 {dimension_numbers = #tpu.dot_dimension_numbers<[1], [0], [0], [1], [0, 0, 1, 1], [], []>} : vector<80x128xbf16>, vector<128x256xbf16>, vector<80x256xf32> -> vector<80x256xf32>
    %c0_9 = arith.constant 0 : index
    %c0_10 = arith.constant 0 : index
    %11 = vector.load %arg6[%c0_9, %c0_10] : memref<1x256xf32, #tpu.memory_space<vmem>>, vector<1x256xf32>
    %12 = vector.broadcast %11 : vector<1x256xf32> to vector<80x256xf32>
    %13 = arith.addf %10, %12 : vector<80x256xf32>
    %14 = arith.negf %8 : vector<80x256xf32>
    %15 = math.exp %14 : vector<80x256xf32>
    %cst_11 = arith.constant 1.000000e+00 : f32
    %16 = vector.broadcast %cst_11 : f32 to vector<80x256xf32>
    %17 = arith.addf %16, %15 : vector<80x256xf32>
    %18 = arith.divf %16, %17 : vector<80x256xf32>
    %19 = arith.mulf %8, %18 : vector<80x256xf32>
    %20 = arith.mulf %19, %13 : vector<80x256xf32>
    %c0_12 = arith.constant 0 : index
    %c0_13 = arith.constant 0 : index
    %21 = vector.load %arg10[%c0_12, %c0_13] : memref<80x128xf32, #tpu.memory_space<vmem>>, vector<80x128xf32>
    %22 = arith.truncf %20 : vector<80x256xf32> to vector<80x256xbf16>
    %c0_14 = arith.constant 0 : index
    %c0_15 = arith.constant 0 : index
    %23 = vector.load %arg7[%c0_14, %c0_15] : memref<256x128xbf16, #tpu.memory_space<vmem>>, vector<256x128xbf16>
    %cst_16 = arith.constant dense<0.000000e+00> : vector<80x128xf32>
    %24 = tpu.matmul %22, %23, %cst_16 {dimension_numbers = #tpu.dot_dimension_numbers<[1], [0], [0], [1], [0, 0, 1, 1], [], []>} : vector<80x256xbf16>, vector<256x128xbf16>, vector<80x128xf32> -> vector<80x128xf32>
    %25 = arith.addf %21, %24 : vector<80x128xf32>
    %c0_17 = arith.constant 0 : index
    %c0_18 = arith.constant 0 : index
    %26 = vector.load %arg10[%c0_17, %c0_18] : memref<80x128xf32, #tpu.memory_space<vmem>>, vector<80x128xf32>
    tpu.vector_store %arg10[%c0_17, %c0_18], %25 {strides = array<i32>} : memref<80x128xf32, #tpu.memory_space<vmem>>, vector<80x128xf32>,
    %c0_i32_19 = arith.constant 0 : i32
    %27 = arith.cmpi eq, %arg1, %c0_i32_19 : i32
    %28 = arith.extui %27 : i1 to i32
    %c0_i32_20 = arith.constant 0 : i32
    %29 = arith.cmpi ne, %28, %c0_i32_20 : i32
    scf.if %29 {
      %c0_21 = arith.constant 0 : index
      %c0_22 = arith.constant 0 : index
      %30 = vector.load %arg10[%c0_21, %c0_22] : memref<80x128xf32, #tpu.memory_space<vmem>>, vector<80x128xf32>
      %c0_23 = arith.constant 0 : index
      %c0_24 = arith.constant 0 : index
      %31 = vector.load %arg8[%c0_23, %c0_24] : memref<1x128xf32, #tpu.memory_space<vmem>>, vector<1x128xf32>
      %32 = vector.broadcast %31 : vector<1x128xf32> to vector<80x128xf32>
      %33 = arith.addf %30, %32 : vector<80x128xf32>
      %c0_25 = arith.constant 0 : index
      %c0_26 = arith.constant 0 : index
      %34 = vector.load %arg9[%c0_25, %c0_26] : memref<80x128xf32, #tpu.memory_space<vmem>>, vector<80x128xf32>
      tpu.vector_store %arg9[%c0_25, %c0_26], %33 {strides = array<i32>} : memref<80x128xf32, #tpu.memory_space<vmem>>, vector<80x128xf32>,
    } else {
    }
    return
  }
  func.func @transform_0(%arg0: i32, %arg1: i32) -> (i32, i32) {
    %c0_i32 = arith.constant 0 : i32
    %c0_i32_0 = arith.constant 0 : i32
    return %arg0, %c0_i32 : i32, i32
  }
  func.func @transform_1(%arg0: i32, %arg1: i32) -> (i32, i32) {
    %c0_i32 = arith.constant 0 : i32
    %c0_i32_0 = arith.constant 0 : i32
    return %c0_i32, %arg1 : i32, i32
  }
  func.func @transform_2(%arg0: i32, %arg1: i32) -> (i32, i32) {
    %c0_i32 = arith.constant 0 : i32
    %c0_i32_0 = arith.constant 0 : i32
    return %c0_i32, %arg1 : i32, i32
  }
  func.func @transform_3(%arg0: i32, %arg1: i32) -> (i32, i32) {
    %c0_i32 = arith.constant 0 : i32
    %c0_i32_0 = arith.constant 0 : i32
    return %c0_i32, %arg1 : i32, i32
  }
  func.func @transform_4(%arg0: i32, %arg1: i32) -> (i32, i32) {
    %c0_i32 = arith.constant 0 : i32
    %c0_i32_0 = arith.constant 0 : i32
    return %c0_i32, %arg1 : i32, i32
  }
  func.func @transform_5(%arg0: i32, %arg1: i32) -> (i32, i32) {
    %c0_i32 = arith.constant 0 : i32
    %c0_i32_0 = arith.constant 0 : i32
    return %arg1, %c0_i32 : i32, i32
  }
  func.func @transform_6(%arg0: i32, %arg1: i32) -> (i32, i32) {
    %c0_i32 = arith.constant 0 : i32
    %c0_i32_0 = arith.constant 0 : i32
    %c0_i32_1 = arith.constant 0 : i32
    return %c0_i32, %c0_i32_0 : i32, i32
  }
  func.func @transform_7(%arg0: i32, %arg1: i32) -> (i32, i32) {
    %c0_i32 = arith.constant 0 : i32
    %c0_i32_0 = arith.constant 0 : i32
    return %arg0, %c0_i32 : i32, i32
  }
}

</mosaic_0001>

<llo_original>
// kernel: tpu_custom_call.1
$region0: #{tpu_custom_call.1}
  #allocation0 [shape = 'u32[]', space=smem, size = 0x4, offset = 0x4, fixed_abs, tag = 'smem constant byte address 0x4 - core index']
  #allocation1 [shape = 'u32[144,128]{1,0:T(1,128)}', space=vmem, size = 0x12000, scoped, tag = 'internal scratch']
  #allocation2 [shape = 'f32[80,128]{1,0:T(8,128)}', space=vmem, size = 0xa000, scoped, tag = 'scratch operand']
  %s0 = inlined_call_operand.hbm [shape: bf16[80,128], index: 0, kind: input, shape index: {}]
  %s1 = inlined_call_operand.hbm [shape: bf16[128,256], index: 1, kind: input, shape index: {}]
  %s2 = inlined_call_operand.hbm [shape: bf16[128,256], index: 2, kind: input, shape index: {}]
  %s3 = inlined_call_operand.vmem [shape: f32[1,256], index: 3, kind: input, shape index: {}]
  %s4 = inlined_call_operand.vmem [shape: f32[1,256], index: 4, kind: input, shape index: {}]
  %s5 = inlined_call_operand.hbm [shape: bf16[256,128], index: 5, kind: input, shape index: {}]
  %s6 = inlined_call_operand.vmem [shape: f32[1,128], index: 6, kind: input, shape index: {}]
  %s7 = inlined_call_operand.hbm [shape: f32[80,128], index: 7, kind: output, shape index: {}]
  %s8 = sld [smem:[#allocation0]]
  $region62: #{tpu_custom_call.1} parent=0
    _
  %s10 = ssub.s32 1, %s8
  %s11 = scalar_select 0, %s10, %s8
  $region1: #{tpu_custom_call.1} parent=0
    #allocation3 [shape = 'u8[20480]{0}', space=vmem, size = 0x5000, scoped, tag = 'input window, operand 0, single buffered']
    #allocation4 [shape = 's32[1]{0}', space=sflag, size = 0x4, scoped, tag = 'scoped memory for tpu_custom_call.1']
    #allocation5 [shape = 's32[1]{0}', space=sflag, size = 0x4, scoped, tag = 'scoped memory for tpu_custom_call.1']
    #allocation6 [shape = 'u8[65536]{0}', space=vmem, size = 0x10000, scoped, tag = 'input window, operand 1, single buffered']
    #allocation7 [shape = 's32[1]{0}', space=sflag, size = 0x4, scoped, tag = 'scoped memory for tpu_custom_call.1']
    #allocation8 [shape = 'u8[65536]{0}', space=vmem, size = 0x10000, scoped, tag = 'input window, operand 2, single buffered']
    #allocation9 [shape = 'u8[65536]{0}', space=vmem, size = 0x10000, scoped, tag = 'input window, operand 5, single buffered']
    #allocation10 [shape = 's32[1]{0}', space=sflag, size = 0x4, scoped, tag = 'scoped memory for tpu_custom_call.1']
    #allocation11 [shape = 'u8[40960]{0}', space=vmem, size = 0xa000, scoped, tag = 'output window, operand 0, single buffered']
    %12 = vsyncpa [#allocation4], 0
    %13 = vsyncpa [#allocation7], 0
    %14 = vsyncpa [#allocation10], 0
    %15 = vsyncpa [#allocation5], 0
    // Predicated region
    $region2: #{tpu_custom_call.1} parent=1 // pred_check
      _
    $region3: #{tpu_custom_call.1} parent=1 // pred_check_branch
      %17 = sbr.rel (0) target = $region5
    $region4: #{tpu_custom_call.1} parent=1 // pred_region
      %s19 = ssub.s32 640, 640
      %20 = vsyncadd [#allocation4], %s19
      %s21 = sshll.u32 [#allocation3], 4
      %s22 = int_to_ptr.vmem [resolvable:$true] %s21
      %27 = dma.hbm_to_vmem [thread:$0]  %s0, 640, %s22, [#allocation4], 64, 64, 4
    $region5: #{tpu_custom_call.1} parent=1 // pred_fallthru
      _
    // Predicated region
    $region6: #{tpu_custom_call.1} parent=1 // pred_check
      _
    $region7: #{tpu_custom_call.1} parent=1 // pred_check_branch
      %29 = sbr.rel (0) target = $region9
    $region8: #{tpu_custom_call.1} parent=1 // pred_region
      %s31 = ssub.s32 2048, 2048
      %32 = vsyncadd [#allocation7], %s31
      %s33 = sshll.u32 [#allocation6], 4
      %s34 = int_to_ptr.vmem [resolvable:$true] %s33
      %39 = dma.hbm_to_vmem [thread:$0]  %s1, 2048, %s34, [#allocation7], 128, 128, 8
    $region9: #{tpu_custom_call.1} parent=1 // pred_fallthru
      _
    // Predicated region
    $region10: #{tpu_custom_call.1} parent=1 // pred_check
      _
    $region11: #{tpu_custom_call.1} parent=1 // pred_check_branch
      %41 = sbr.rel (0) target = $region13
    $region12: #{tpu_custom_call.1} parent=1 // pred_region
      %s43 = ssub.s32 2048, 2048
      %44 = vsyncadd [#allocation7], %s43
      %s45 = sshll.u32 [#allocation8], 4
      %s46 = int_to_ptr.vmem [resolvable:$true] %s45
      %51 = dma.hbm_to_vmem [thread:$0]  %s2, 2048, %s46, [#allocation7], 128, 128, 8
    $region13: #{tpu_custom_call.1} parent=1 // pred_fallthru
      _
    // Predicated region
    $region14: #{tpu_custom_call.1} parent=1 // pred_check
      _
    $region15: #{tpu_custom_call.1} parent=1 // pred_check_branch
      %53 = sbr.rel (0) target = $region17
    $region16: #{tpu_custom_call.1} parent=1 // pred_region
      _
    $region17: #{tpu_custom_call.1} parent=1 // pred_fallthru
      _
    // Predicated region
    $region18: #{tpu_custom_call.1} parent=1 // pred_check
      _
    $region19: #{tpu_custom_call.1} parent=1 // pred_check_branch
      %55 = sbr.rel (0) target = $region21
    $region20: #{tpu_custom_call.1} parent=1 // pred_region
      _
    $region21: #{tpu_custom_call.1} parent=1 // pred_fallthru
      _
    // Predicated region
    $region22: #{tpu_custom_call.1} parent=1 // pred_check
      _
    $region23: #{tpu_custom_call.1} parent=1 // pred_check_branch
      %57 = sbr.rel (0) target = $region25
    $region24: #{tpu_custom_call.1} parent=1 // pred_region
      %s59 = ssub.s32 2048, 2048
      %60 = vsyncadd [#allocation10], %s59
      %s61 = sshll.u32 [#allocation9], 4
      %s62 = int_to_ptr.vmem [resolvable:$true] %s61
      %67 = dma.hbm_to_vmem [thread:$0]  %s5, 2048, %s62, [#allocation10], 64, 64, 4
    $region25: #{tpu_custom_call.1} parent=1 // pred_fallthru
      _
    // Predicated region
    $region26: #{tpu_custom_call.1} parent=1 // pred_check
      _
    $region27: #{tpu_custom_call.1} parent=1 // pred_check_branch
      %69 = sbr.rel (0) target = $region29
    $region28: #{tpu_custom_call.1} parent=1 // pred_region
      _
    $region29: #{tpu_custom_call.1} parent=1 // pred_fallthru
      _
    // Predicated region
    $region30: #{tpu_custom_call.1} parent=1 // pred_check
      _
    $region31: #{tpu_custom_call.1} parent=1 // pred_check_branch
      %71 = sbr.rel (0) target = $region33
    $region32: #{tpu_custom_call.1} parent=1 // pred_region
      %72 = dma.done [#allocation4], 640
    $region33: #{tpu_custom_call.1} parent=1 // pred_fallthru
      _
    // Predicated region
    $region34: #{tpu_custom_call.1} parent=1 // pred_check
      _
    $region35: #{tpu_custom_call.1} parent=1 // pred_check_branch
      %74 = sbr.rel (0) target = $region37
    $region36: #{tpu_custom_call.1} parent=1 // pred_region
      %75 = dma.done [#allocation7], 2048
    $region37: #{tpu_custom_call.1} parent=1 // pred_fallthru
      _
    // Predicated region
    $region38: #{tpu_custom_call.1} parent=1 // pred_check
      _
    $region39: #{tpu_custom_call.1} parent=1 // pred_check_branch
      %77 = sbr.rel (0) target = $region41
    $region40: #{tpu_custom_call.1} parent=1 // pred_region
      %78 = dma.done [#allocation7], 2048
    $region41: #{tpu_custom_call.1} parent=1 // pred_fallthru
      _
    // Predicated region
    $region42: #{tpu_custom_call.1} parent=1 // pred_check
      _
    $region43: #{tpu_custom_call.1} parent=1 // pred_check_branch
      %80 = sbr.rel (0) target = $region45
    $region44: #{tpu_custom_call.1} parent=1 // pred_region
      %81 = dma.done [#allocation10], 2048
    $region45: #{tpu_custom_call.1} parent=1 // pred_fallthru
      _
    %p83 = scmp.eq.s32.totalorder 0, 0
    // Predicated region
    $region46: #{tpu_custom_call.1} parent=1 // pred_check
      %p84 = pneg %p83
    $region47: #{tpu_custom_call.1} parent=1 // pred_check_branch
      %86 = sbr.rel (%p84) target = $region49
    $region48: #{tpu_custom_call.1} parent=1 // pred_region
      %87 = vst [vmem:[#allocation2] sm:$0xff] 0.0
      %88 = vst [vmem:[#allocation2 + $0x8] sm:$0xff] 0.0
      %89 = vst [vmem:[#allocation2 + $0x10] sm:$0xff] 0.0
      %90 = vst [vmem:[#allocation2 + $0x18] sm:$0xff] 0.0
      %91 = vst [vmem:[#allocation2 + $0x20] sm:$0xff] 0.0
      %92 = vst [vmem:[#allocation2 + $0x28] sm:$0xff] 0.0
      %93 = vst [vmem:[#allocation2 + $0x30] sm:$0xff] 0.0
      %94 = vst [vmem:[#allocation2 + $0x38] sm:$0xff] 0.0
      %95 = vst [vmem:[#allocation2 + $0x40] sm:$0xff] 0.0
      %96 = vst [vmem:[#allocation2 + $0x48] sm:$0xff] 0.0
    $region49: #{tpu_custom_call.1} parent=1 // pred_fallthru
      _
    %v97 = vld [vmem:[#allocation3] sm:$0xf]
    %v98 = vld [vmem:[#allocation3 + $0x4] sm:$0xf]
    %v99 = vld [vmem:[#allocation3 + $0x8] sm:$0xf]
    %v100 = vld [vmem:[#allocation3 + $0xc] sm:$0xf]
    %v101 = vld [vmem:[#allocation3 + $0x10] sm:$0xf]
    %v102 = vld [vmem:[#allocation3 + $0x14] sm:$0xf]
    %v103 = vld [vmem:[#allocation3 + $0x18] sm:$0xf]
    %v104 = vld [vmem:[#allocation3 + $0x1c] sm:$0xf]
    %v105 = vld [vmem:[#allocation3 + $0x20] sm:$0xf]
    %v106 = vld [vmem:[#allocation3 + $0x24] sm:$0xf]
    %v107 = vld [vmem:[#allocation6] sm:$0xff]
    %v108 = vld [vmem:[#allocation6 + $0x8] sm:$0xff]
    %v109 = vld [vmem:[#allocation6 + $0x10] sm:$0xff]
    %v110 = vld [vmem:[#allocation6 + $0x18] sm:$0xff]
    %v111 = vld [vmem:[#allocation6 + $0x20] sm:$0xff]
    %v112 = vld [vmem:[#allocation6 + $0x28] sm:$0xff]
    %v113 = vld [vmem:[#allocation6 + $0x30] sm:$0xff]
    %v114 = vld [vmem:[#allocation6 + $0x38] sm:$0xff]
    %v115 = vld [vmem:[#allocation6 + $0x40] sm:$0xff]
    %v116 = vld [vmem:[#allocation6 + $0x48] sm:$0xff]
    %v117 = vld [vmem:[#allocation6 + $0x50] sm:$0xff]
    %v118 = vld [vmem:[#allocation6 + $0x58] sm:$0xff]
    %v119 = vld [vmem:[#allocation6 + $0x60] sm:$0xff]
    %v120 = vld [vmem:[#allocation6 + $0x68] sm:$0xff]
    %v121 = vld [vmem:[#allocation6 + $0x70] sm:$0xff]
    %v122 = vld [vmem:[#allocation6 + $0x78] sm:$0xff]
    %v123 = vld [vmem:[%s3] sm:$0x3]
    %v125 = vlaneseq
    %v126 = vshrl.u32 %v125, 7
    %v127 = vsub.s32 0, %v126
    %v128 = vrot.slane %v123, %v127
    %v129 = vlaneseq
    %v130 = vshrl.u32 %v129, 7
    %v131 = vsub.s32 1, %v130
    %v132 = vrot.slane %v123, %v131
    %v145 = vunpack.c.l.b16 %v97
    %v146 = vunpack.c.l.b16 %v98
    %v147 = vunpack.c.l.b16 %v99
    %v148 = vunpack.c.l.b16 %v100
    %v149 = vunpack.c.l.b16 %v101
    %v150 = vunpack.c.l.b16 %v102
    %v151 = vunpack.c.l.b16 %v103
    %v152 = vunpack.c.l.b16 %v104
    %v153 = vunpack.c.l.b16 %v105
    %v154 = vunpack.c.l.b16 %v106
    %v155 = vpack.c.b16 %v146, %v145
    %v156 = vpack.c.b16 %v148, %v147
    %v157 = vpack.c.b16 %v150, %v149
    %v158 = vpack.c.b16 %v152, %v151
    %v159 = vpack.c.b16 %v154, %v153
    %v181 = vunpack.c.l.b16 %v107
    %v182 = vunpack.c.h.b16 %v107
    %v183 = vunpack.c.l.b16 %v108
    %v184 = vunpack.c.h.b16 %v108
    %v185 = vunpack.c.l.b16 %v109
    %v186 = vunpack.c.h.b16 %v109
    %v187 = vunpack.c.l.b16 %v110
    %v188 = vunpack.c.h.b16 %v110
    %v189 = vunpack.c.l.b16 %v111
    %v190 = vunpack.c.h.b16 %v111
    %v191 = vunpack.c.l.b16 %v112
    %v192 = vunpack.c.h.b16 %v112
    %v193 = vunpack.c.l.b16 %v113
    %v194 = vunpack.c.h.b16 %v113
    %v195 = vunpack.c.l.b16 %v114
    %v196 = vunpack.c.h.b16 %v114
    %v197 = vunpack.c.l.b16 %v115
    %v198 = vunpack.c.h.b16 %v115
    %v199 = vunpack.c.l.b16 %v116
    %v200 = vunpack.c.h.b16 %v116
    %v201 = vunpack.c.l.b16 %v117
    %v202 = vunpack.c.h.b16 %v117
    %v203 = vunpack.c.l.b16 %v118
    %v204 = vunpack.c.h.b16 %v118
    %v205 = vunpack.c.l.b16 %v119
    %v206 = vunpack.c.h.b16 %v119
    %v207 = vunpack.c.l.b16 %v120
    %v208 = vunpack.c.h.b16 %v120
    %v209 = vunpack.c.l.b16 %v121
    %v210 = vunpack.c.h.b16 %v121
    %v211 = vunpack.c.l.b16 %v122
    %v212 = vunpack.c.h.b16 %v122
    %v213 = vpack.c.b16 %v183, %v181
    %v214 = vpack.c.b16 %v184, %v182
    %v215 = vpack.c.b16 %v187, %v185
    %v216 = vpack.c.b16 %v188, %v186
    %v217 = vpack.c.b16 %v191, %v189
    %v218 = vpack.c.b16 %v192, %v190
    %v219 = vpack.c.b16 %v195, %v193
    %v220 = vpack.c.b16 %v196, %v194
    %v221 = vpack.c.b16 %v199, %v197
    %v222 = vpack.c.b16 %v200, %v198
    %v223 = vpack.c.b16 %v203, %v201
    %v224 = vpack.c.b16 %v204, %v202
    %v225 = vpack.c.b16 %v207, %v205
    %v226 = vpack.c.b16 %v208, %v206
    %v227 = vpack.c.b16 %v211, %v209
    %v228 = vpack.c.b16 %v212, %v210
    %245 = vmatprep.subr.bf16.mxu0 %v228
    %246 = vmatpush1.bf16.msra.mxu0 %v227
    %247 = vmatprep.subr.bf16.mxu0 %v226
    %248 = vmatpush1.bf16.msra.mxu0 %v225
    %249 = vmatprep.subr.bf16.mxu0 %v224
    %250 = vmatpush1.bf16.msra.mxu0 %v223
    %251 = vmatprep.subr.bf16.mxu0 %v222
    %252 = vmatpush1.bf16.msra.mxu0 %v221
    %253 = vmatprep.subr.bf16.mxu0 %v220
    %254 = vmatpush1.bf16.msra.mxu0 %v219
    %255 = vmatprep.subr.bf16.mxu0 %v218
    %256 = vmatpush1.bf16.msra.mxu0 %v217
    %257 = vmatprep.subr.bf16.mxu0 %v216
    %258 = vmatpush1.bf16.msra.mxu0 %v215
    %259 = vmatprep.subr.bf16.mxu0 %v214
    %260 = vmatpush1.bf16.msra.mxu0 %v213
    %261 = vmatprep.subr.bf16.mxu0 0
    %262 = vmatpush2.bf16.msra.mxu0 0
    %263 = vmatprep.subr.bf16.mxu0 0
    %264 = vmatpush2.bf16.msra.mxu0 0
    %265 = vmatprep.subr.bf16.mxu0 0
    %266 = vmatpush2.bf16.msra.mxu0 0
    %267 = vmatprep.subr.bf16.mxu0 0
    %268 = vmatpush2.bf16.msra.mxu0 0
    %269 = vmatprep.subr.bf16.mxu0 0
    %270 = vmatpush2.bf16.msra.mxu0 0
    %271 = vmatprep.subr.bf16.mxu0 0
    %272 = vmatpush2.bf16.msra.mxu0 0
    %273 = vmatprep.subr.bf16.mxu0 0
    %274 = vmatpush2.bf16.msra.mxu0 0
    %275 = vmatprep.subr.bf16.mxu0 0
    %276 = vmatpush2.bf16.msra.mxu0 0
    %277 = vmatprep.mubr.bf16.mxu0 0
    %278 = vmatmul.mubr.bf16.gmra.mxu0 %v155
    %v279 = vpop.f32.mrf.mxu0
    %v280 = vadd.f32 %v128, %v279
    %v281 = vpop.f32.mrf.mxu0
    %v282 = vadd.f32 %v132, %v281
    %v283 = vpop.f32.mrf.mxu0
    %v284 = vadd.f32 %v128, %v283
    %v285 = vpop.f32.mrf.mxu0
    %v286 = vadd.f32 %v132, %v285
    %287 = vmatprep.mubr.bf16.mxu0 0
    %288 = vmatmul.mubr.bf16.gmra.mxu0 %v156
    %v289 = vpop.f32.mrf.mxu0
    %v290 = vadd.f32 %v128, %v289
    %v291 = vpop.f32.mrf.mxu0
    %v292 = vadd.f32 %v132, %v291
    %v293 = vpop.f32.mrf.mxu0
    %v294 = vadd.f32 %v128, %v293
    %v295 = vpop.f32.mrf.mxu0
    %v296 = vadd.f32 %v132, %v295
    %297 = vmatprep.mubr.bf16.mxu0 0
    %298 = vmatmul.mubr.bf16.gmra.mxu0 %v157
    %v299 = vpop.f32.mrf.mxu0
    %v300 = vadd.f32 %v128, %v299
    %v301 = vpop.f32.mrf.mxu0
    %v302 = vadd.f32 %v132, %v301
    %v303 = vpop.f32.mrf.mxu0
    %v304 = vadd.f32 %v128, %v303
    %v305 = vpop.f32.mrf.mxu0
    %v306 = vadd.f32 %v132, %v305
    %307 = vmatprep.mubr.bf16.mxu0 0
    %308 = vmatmul.mubr.bf16.gmra.mxu0 %v158
    %v309 = vpop.f32.mrf.mxu0
    %v310 = vadd.f32 %v128, %v309
    %v311 = vpop.f32.mrf.mxu0
    %v312 = vadd.f32 %v132, %v311
    %v313 = vpop.f32.mrf.mxu0
    %v314 = vadd.f32 %v128, %v313
    %v315 = vpop.f32.mrf.mxu0
    %v316 = vadd.f32 %v132, %v315
    %317 = vmatprep.mubr.bf16.mxu0 0
    %318 = vmatmul.mubr.bf16.gmra.mxu0 %v159
    %v319 = vpop.f32.mrf.mxu0
    %v320 = vadd.f32 %v128, %v319
    %v321 = vpop.f32.mrf.mxu0
    %v322 = vadd.f32 %v132, %v321
    %v323 = vpop.f32.mrf.mxu0
    %v324 = vadd.f32 %v128, %v323
    %v325 = vpop.f32.mrf.mxu0
    %v326 = vadd.f32 %v132, %v325
    %327 = vdwg.mxu0
    %v328 = vld [vmem:[#allocation8] sm:$0xff]
    %v329 = vld [vmem:[#allocation8 + $0x8] sm:$0xff]
    %v330 = vld [vmem:[#allocation8 + $0x10] sm:$0xff]
    %v331 = vld [vmem:[#allocation8 + $0x18] sm:$0xff]
    %v332 = vld [vmem:[#allocation8 + $0x20] sm:$0xff]
    %v333 = vld [vmem:[#allocation8 + $0x28] sm:$0xff]
    %v334 = vld [vmem:[#allocation8 + $0x30] sm:$0xff]
    %v335 = vld [vmem:[#allocation8 + $0x38] sm:$0xff]
    %v336 = vld [vmem:[#allocation8 + $0x40] sm:$0xff]
    %v337 = vld [vmem:[#allocation8 + $0x48] sm:$0xff]
    %v338 = vld [vmem:[#allocation8 + $0x50] sm:$0xff]
    %v339 = vld [vmem:[#allocation8 + $0x58] sm:$0xff]
    %v340 = vld [vmem:[#allocation8 + $0x60] sm:$0xff]
    %v341 = vld [vmem:[#allocation8 + $0x68] sm:$0xff]
    %v342 = vld [vmem:[#allocation8 + $0x70] sm:$0xff]
    %v343 = vld [vmem:[#allocation8 + $0x78] sm:$0xff]
    %v344 = vld [vmem:[%s4] sm:$0x3]
    %v346 = vlaneseq
    %v347 = vshrl.u32 %v346, 7
    %v348 = vsub.s32 0, %v347
    %v349 = vrot.slane %v344, %v348
    %v350 = vlaneseq
    %v351 = vshrl.u32 %v350, 7
    %v352 = vsub.s32 1, %v351
    %v353 = vrot.slane %v344, %v352
    %v372 = vunpack.c.l.b16 %v328
    %v373 = vunpack.c.h.b16 %v328
    %v374 = vunpack.c.l.b16 %v329
    %v375 = vunpack.c.h.b16 %v329
    %v376 = vunpack.c.l.b16 %v330
    %v377 = vunpack.c.h.b16 %v330
    %v378 = vunpack.c.l.b16 %v331
    %v379 = vunpack.c.h.b16 %v331
    %v380 = vunpack.c.l.b16 %v332
    %v381 = vunpack.c.h.b16 %v332
    %v382 = vunpack.c.l.b16 %v333
    %v383 = vunpack.c.h.b16 %v333
    %v384 = vunpack.c.l.b16 %v334
    %v385 = vunpack.c.h.b16 %v334
    %v386 = vunpack.c.l.b16 %v335
    %v387 = vunpack.c.h.b16 %v335
    %v388 = vunpack.c.l.b16 %v336
    %v389 = vunpack.c.h.b16 %v336
    %v390 = vunpack.c.l.b16 %v337
    %v391 = vunpack.c.h.b16 %v337
    %v392 = vunpack.c.l.b16 %v338
    %v393 = vunpack.c.h.b16 %v338
    %v394 = vunpack.c.l.b16 %v339
    %v395 = vunpack.c.h.b16 %v339
    %v396 = vunpack.c.l.b16 %v340
    %v397 = vunpack.c.h.b16 %v340
    %v398 = vunpack.c.l.b16 %v341
    %v399 = vunpack.c.h.b16 %v341
    %v400 = vunpack.c.l.b16 %v342
    %v401 = vunpack.c.h.b16 %v342
    %v402 = vunpack.c.l.b16 %v343
    %v403 = vunpack.c.h.b16 %v343
    %v404 = vpack.c.b16 %v374, %v372
    %v405 = vpack.c.b16 %v375, %v373
    %v406 = vpack.c.b16 %v378, %v376
    %v407 = vpack.c.b16 %v379, %v377
    %v408 = vpack.c.b16 %v382, %v380
    %v409 = vpack.c.b16 %v383, %v381
    %v410 = vpack.c.b16 %v386, %v384
    %v411 = vpack.c.b16 %v387, %v385
    %v412 = vpack.c.b16 %v390, %v388
    %v413 = vpack.c.b16 %v391, %v389
    %v414 = vpack.c.b16 %v394, %v392
    %v415 = vpack.c.b16 %v395, %v393
    %v416 = vpack.c.b16 %v398, %v396
    %v417 = vpack.c.b16 %v399, %v397
    %v418 = vpack.c.b16 %v402, %v400
    %v419 = vpack.c.b16 %v403, %v401
    %436 = vmatprep.subr.bf16.mxu0 %v419
    %437 = vmatpush1.bf16.msra.mxu0 %v418
    %438 = vmatprep.subr.bf16.mxu0 %v417
    %439 = vmatpush1.bf16.msra.mxu0 %v416
    %440 = vmatprep.subr.bf16.mxu0 %v415
    %441 = vmatpush1.bf16.msra.mxu0 %v414
    %442 = vmatprep.subr.bf16.mxu0 %v413
    %443 = vmatpush1.bf16.msra.mxu0 %v412
    %444 = vmatprep.subr.bf16.mxu0 %v411
    %445 = vmatpush1.bf16.msra.mxu0 %v410
    %446 = vmatprep.subr.bf16.mxu0 %v409
    %447 = vmatpush1.bf16.msra.mxu0 %v408
    %448 = vmatprep.subr.bf16.mxu0 %v407
    %449 = vmatpush1.bf16.msra.mxu0 %v406
    %450 = vmatprep.subr.bf16.mxu0 %v405
    %451 = vmatpush1.bf16.msra.mxu0 %v404
    %452 = vmatprep.subr.bf16.mxu0 0
    %453 = vmatpush2.bf16.msra.mxu0 0
    %454 = vmatprep.subr.bf16.mxu0 0
    %455 = vmatpush2.bf16.msra.mxu0 0
    %456 = vmatprep.subr.bf16.mxu0 0
    %457 = vmatpush2.bf16.msra.mxu0 0
    %458 = vmatprep.subr.bf16.mxu0 0
    %459 = vmatpush2.bf16.msra.mxu0 0
    %460 = vmatprep.subr.bf16.mxu0 0
    %461 = vmatpush2.bf16.msra.mxu0 0
    %462 = vmatprep.subr.bf16.mxu0 0
    %463 = vmatpush2.bf16.msra.mxu0 0
    %464 = vmatprep.subr.bf16.mxu0 0
    %465 = vmatpush2.bf16.msra.mxu0 0
    %466 = vmatprep.subr.bf16.mxu0 0
    %467 = vmatpush2.bf16.msra.mxu0 0
    %468 = vmatprep.mubr.bf16.mxu0 0
    %469 = vmatmul.mubr.bf16.gmra.mxu0 %v155
    %v470 = vpop.f32.mrf.mxu0
    %v471 = vadd.f32 %v349, %v470
    %v472 = vpop.f32.mrf.mxu0
    %v473 = vadd.f32 %v353, %v472
    %v474 = vpop.f32.mrf.mxu0
    %v475 = vadd.f32 %v349, %v474
    %v476 = vpop.f32.mrf.mxu0
    %v477 = vadd.f32 %v353, %v476
    %478 = vmatprep.mubr.bf16.mxu0 0
    %479 = vmatmul.mubr.bf16.gmra.mxu0 %v156
    %v480 = vpop.f32.mrf.mxu0
    %v481 = vadd.f32 %v349, %v480
    %v482 = vpop.f32.mrf.mxu0
    %v483 = vadd.f32 %v353, %v482
    %v484 = vpop.f32.mrf.mxu0
    %v485 = vadd.f32 %v349, %v484
    %v486 = vpop.f32.mrf.mxu0
    %v487 = vadd.f32 %v353, %v486
    %488 = vmatprep.mubr.bf16.mxu0 0
    %489 = vmatmul.mubr.bf16.gmra.mxu0 %v157
    %v490 = vpop.f32.mrf.mxu0
    %v491 = vadd.f32 %v349, %v490
    %v492 = vpop.f32.mrf.mxu0
    %v493 = vadd.f32 %v353, %v492
    %v494 = vpop.f32.mrf.mxu0
    %v495 = vadd.f32 %v349, %v494
    %v496 = vpop.f32.mrf.mxu0
    %v497 = vadd.f32 %v353, %v496
    %498 = vmatprep.mubr.bf16.mxu0 0
    %499 = vmatmul.mubr.bf16.gmra.mxu0 %v158
    %v500 = vpop.f32.mrf.mxu0
    %v501 = vadd.f32 %v349, %v500
    %v502 = vpop.f32.mrf.mxu0
    %v503 = vadd.f32 %v353, %v502
    %v504 = vpop.f32.mrf.mxu0
    %v505 = vadd.f32 %v349, %v504
    %v506 = vpop.f32.mrf.mxu0
    %v507 = vadd.f32 %v353, %v506
    %508 = vmatprep.mubr.bf16.mxu0 0
    %509 = vmatmul.mubr.bf16.gmra.mxu0 %v159
    %v510 = vpop.f32.mrf.mxu0
    %v511 = vadd.f32 %v349, %v510
    %v512 = vpop.f32.mrf.mxu0
    %v513 = vadd.f32 %v353, %v512
    %v514 = vpop.f32.mrf.mxu0
    %v515 = vadd.f32 %v349, %v514
    %v516 = vpop.f32.mrf.mxu0
    %v517 = vadd.f32 %v353, %v516
    %518 = vdwg.mxu0
    %v519 = vxor.u32 %v280, 2147483648
    %v520 = vxor.u32 %v282, 2147483648
    %v521 = vxor.u32 %v284, 2147483648
    %v522 = vxor.u32 %v286, 2147483648
    %v523 = vxor.u32 %v290, 2147483648
    %v524 = vxor.u32 %v292, 2147483648
    %v525 = vxor.u32 %v294, 2147483648
    %v526 = vxor.u32 %v296, 2147483648
    %v527 = vxor.u32 %v300, 2147483648
    %v528 = vxor.u32 %v302, 2147483648
    %v529 = vxor.u32 %v304, 2147483648
    %v530 = vxor.u32 %v306, 2147483648
    %v531 = vxor.u32 %v310, 2147483648
    %v532 = vxor.u32 %v312, 2147483648
    %v533 = vxor.u32 %v314, 2147483648
    %v534 = vxor.u32 %v316, 2147483648
    %v535 = vxor.u32 %v320, 2147483648
    %v536 = vxor.u32 %v322, 2147483648
    %v537 = vxor.u32 %v324, 2147483648
    %v538 = vxor.u32 %v326, 2147483648
    %v539 = vmul.f32 %v519, 1.442695
    %v540 = vpow.pop %v539
    %v541 = vmul.f32 %v520, 1.442695
    %v542 = vpow.pop %v541
    %v543 = vmul.f32 %v521, 1.442695
    %v544 = vpow.pop %v543
    %v545 = vmul.f32 %v522, 1.442695
    %v546 = vpow.pop %v545
    %v547 = vmul.f32 %v523, 1.442695
    %v548 = vpow.pop %v547
    %v549 = vmul.f32 %v524, 1.442695
    %v550 = vpow.pop %v549
    %v551 = vmul.f32 %v525, 1.442695
    %v552 = vpow.pop %v551
    %v553 = vmul.f32 %v526, 1.442695
    %v554 = vpow.pop %v553
    %v555 = vmul.f32 %v527, 1.442695
    %v556 = vpow.pop %v555
    %v557 = vmul.f32 %v528, 1.442695
    %v558 = vpow.pop %v557
    %v559 = vmul.f32 %v529, 1.442695
    %v560 = vpow.pop %v559
    %v561 = vmul.f32 %v530, 1.442695
    %v562 = vpow.pop %v561
    %v563 = vmul.f32 %v531, 1.442695
    %v564 = vpow.pop %v563
    %v565 = vmul.f32 %v532, 1.442695
    %v566 = vpow.pop %v565
    %v567 = vmul.f32 %v533, 1.442695
    %v568 = vpow.pop %v567
    %v569 = vmul.f32 %v534, 1.442695
    %v570 = vpow.pop %v569
    %v571 = vmul.f32 %v535, 1.442695
    %v572 = vpow.pop %v571
    %v573 = vmul.f32 %v536, 1.442695
    %v574 = vpow.pop %v573
    %v575 = vmul.f32 %v537, 1.442695
    %v576 = vpow.pop %v575
    %v577 = vmul.f32 %v538, 1.442695
    %v578 = vpow.pop %v577
    %v579 = vadd.f32 %v540, 1.0
    %v580 = vadd.f32 %v542, 1.0
    %v581 = vadd.f32 %v544, 1.0
    %v582 = vadd.f32 %v546, 1.0
    %v583 = vadd.f32 %v548, 1.0
    %v584 = vadd.f32 %v550, 1.0
    %v585 = vadd.f32 %v552, 1.0
    %v586 = vadd.f32 %v554, 1.0
    %v587 = vadd.f32 %v556, 1.0
    %v588 = vadd.f32 %v558, 1.0
    %v589 = vadd.f32 %v560, 1.0
    %v590 = vadd.f32 %v562, 1.0
    %v591 = vadd.f32 %v564, 1.0
    %v592 = vadd.f32 %v566, 1.0
    %v593 = vadd.f32 %v568, 1.0
    %v594 = vadd.f32 %v570, 1.0
    %v595 = vadd.f32 %v572, 1.0
    %v596 = vadd.f32 %v574, 1.0
    %v597 = vadd.f32 %v576, 1.0
    %v598 = vadd.f32 %v578, 1.0
    %v599 = vrcp.pop %v579
    %v600 = vmul.f32 1.0, %v599
    %v601 = vrcp.pop %v580
    %v602 = vmul.f32 1.0, %v601
    %v603 = vrcp.pop %v581
    %v604 = vmul.f32 1.0, %v603
    %v605 = vrcp.pop %v582
    %v606 = vmul.f32 1.0, %v605
    %v607 = vrcp.pop %v583
    %v608 = vmul.f32 1.0, %v607
    %v609 = vrcp.pop %v584
    %v610 = vmul.f32 1.0, %v609
    %v611 = vrcp.pop %v585
    %v612 = vmul.f32 1.0, %v611
    %v613 = vrcp.pop %v586
    %v614 = vmul.f32 1.0, %v613
    %v615 = vrcp.pop %v587
    %v616 = vmul.f32 1.0, %v615
    %v617 = vrcp.pop %v588
    %v618 = vmul.f32 1.0, %v617
    %v619 = vrcp.pop %v589
    %v620 = vmul.f32 1.0, %v619
    %v621 = vrcp.pop %v590
    %v622 = vmul.f32 1.0, %v621
    %v623 = vrcp.pop %v591
    %v624 = vmul.f32 1.0, %v623
    %v625 = vrcp.pop %v592
    %v626 = vmul.f32 1.0, %v625
    %v627 = vrcp.pop %v593
    %v628 = vmul.f32 1.0, %v627
    %v629 = vrcp.pop %v594
    %v630 = vmul.f32 1.0, %v629
    %v631 = vrcp.pop %v595
    %v632 = vmul.f32 1.0, %v631
    %v633 = vrcp.pop %v596
    %v634 = vmul.f32 1.0, %v633
    %v635 = vrcp.pop %v597
    %v636 = vmul.f32 1.0, %v635
    %v637 = vrcp.pop %v598
    %v638 = vmul.f32 1.0, %v637
    %v639 = vmul.f32 %v280, %v600
    %v640 = vmul.f32 %v282, %v602
    %v641 = vmul.f32 %v284, %v604
    %v642 = vmul.f32 %v286, %v606
    %v643 = vmul.f32 %v290, %v608
    %v644 = vmul.f32 %v292, %v610
    %v645 = vmul.f32 %v294, %v612
    %v646 = vmul.f32 %v296, %v614
    %v647 = vmul.f32 %v300, %v616
    %v648 = vmul.f32 %v302, %v618
    %v649 = vmul.f32 %v304, %v620
    %v650 = vmul.f32 %v306, %v622
    %v651 = vmul.f32 %v310, %v624
    %v652 = vmul.f32 %v312, %v626
    %v653 = vmul.f32 %v314, %v628
    %v654 = vmul.f32 %v316, %v630
    %v655 = vmul.f32 %v320, %v632
    %v656 = vmul.f32 %v322, %v634
    %v657 = vmul.f32 %v324, %v636
    %v658 = vmul.f32 %v326, %v638
    %v659 = vmul.f32 %v639, %v471
    %v660 = vmul.f32 %v640, %v473
    %v661 = vmul.f32 %v641, %v475
    %v662 = vmul.f32 %v642, %v477
    %v663 = vmul.f32 %v643, %v481
    %v664 = vmul.f32 %v644, %v483
    %v665 = vmul.f32 %v645, %v485
    %v666 = vmul.f32 %v646, %v487
    %v667 = vmul.f32 %v647, %v491
    %v668 = vmul.f32 %v648, %v493
    %v669 = vmul.f32 %v649, %v495
    %v670 = vmul.f32 %v650, %v497
    %v671 = vmul.f32 %v651, %v501
    %v672 = vmul.f32 %v652, %v503
    %v673 = vmul.f32 %v653, %v505
    %v674 = vmul.f32 %v654, %v507
    %v675 = vmul.f32 %v655, %v511
    %v676 = vmul.f32 %v656, %v513
    %v677 = vmul.f32 %v657, %v515
    %v678 = vmul.f32 %v658, %v517
    %v679 = vld [vmem:[#allocation2] sm:$0xff]
    %v680 = vld [vmem:[#allocation2 + $0x8] sm:$0xff]
    %v681 = vld [vmem:[#allocation2 + $0x10] sm:$0xff]
    %v682 = vld [vmem:[#allocation2 + $0x18] sm:$0xff]
    %v683 = vld [vmem:[#allocation2 + $0x20] sm:$0xff]
    %v684 = vld [vmem:[#allocation2 + $0x28] sm:$0xff]
    %v685 = vld [vmem:[#allocation2 + $0x30] sm:$0xff]
    %v686 = vld [vmem:[#allocation2 + $0x38] sm:$0xff]
    %v687 = vld [vmem:[#allocation2 + $0x40] sm:$0xff]
    %v688 = vld [vmem:[#allocation2 + $0x48] sm:$0xff]
    %v689 = vpack.c.bf16 %v661, %v659
    %v690 = vpack.c.bf16 %v662, %v660
    %v691 = vpack.c.bf16 %v665, %v663
    %v692 = vpack.c.bf16 %v666, %v664
    %v693 = vpack.c.bf16 %v669, %v667
    %v694 = vpack.c.bf16 %v670, %v668
    %v695 = vpack.c.bf16 %v673, %v671
    %v696 = vpack.c.bf16 %v674, %v672
    %v697 = vpack.c.bf16 %v677, %v675
    %v698 = vpack.c.bf16 %v678, %v676
    %v699 = vld [vmem:[#allocation9] sm:$0xf]
    %v700 = vld [vmem:[#allocation9 + $0x4] sm:$0xf]
    %v701 = vld [vmem:[#allocation9 + $0x8] sm:$0xf]
    %v702 = vld [vmem:[#allocation9 + $0xc] sm:$0xf]
    %v703 = vld [vmem:[#allocation9 + $0x10] sm:$0xf]
    %v704 = vld [vmem:[#allocation9 + $0x14] sm:$0xf]
    %v705 = vld [vmem:[#allocation9 + $0x18] sm:$0xf]
    %v706 = vld [vmem:[#allocation9 + $0x1c] sm:$0xf]
    %v707 = vld [vmem:[#allocation9 + $0x20] sm:$0xf]
    %v708 = vld [vmem:[#allocation9 + $0x24] sm:$0xf]
    %v709 = vld [vmem:[#allocation9 + $0x28] sm:$0xf]
    %v710 = vld [vmem:[#allocation9 + $0x2c] sm:$0xf]
    %v711 = vld [vmem:[#allocation9 + $0x30] sm:$0xf]
    %v712 = vld [vmem:[#allocation9 + $0x34] sm:$0xf]
    %v713 = vld [vmem:[#allocation9 + $0x38] sm:$0xf]
    %v714 = vld [vmem:[#allocation9 + $0x3c] sm:$0xf]
    %v715 = vld [vmem:[#allocation9 + $0x40] sm:$0xf]
    %v716 = vld [vmem:[#allocation9 + $0x44] sm:$0xf]
    %v717 = vld [vmem:[#allocation9 + $0x48] sm:$0xf]
    %v718 = vld [vmem:[#allocation9 + $0x4c] sm:$0xf]
    %v719 = vld [vmem:[#allocation9 + $0x50] sm:$0xf]
    %v720 = vld [vmem:[#allocation9 + $0x54] sm:$0xf]
    %v721 = vld [vmem:[#allocation9 + $0x58] sm:$0xf]
    %v722 = vld [vmem:[#allocation9 + $0x5c] sm:$0xf]
    %v723 = vld [vmem:[#allocation9 + $0x60] sm:$0xf]
    %v724 = vld [vmem:[#allocation9 + $0x64] sm:$0xf]
    %v725 = vld [vmem:[#allocation9 + $0x68] sm:$0xf]
    %v726 = vld [vmem:[#allocation9 + $0x6c] sm:$0xf]
    %v727 = vld [vmem:[#allocation9 + $0x70] sm:$0xf]
    %v728 = vld [vmem:[#allocation9 + $0x74] sm:$0xf]
    %v729 = vld [vmem:[#allocation9 + $0x78] sm:$0xf]
    %v730 = vld [vmem:[#allocation9 + $0x7c] sm:$0xf]
    %v763 = vunpack.c.l.b16 %v699
    %v764 = vunpack.c.l.b16 %v700
    %v765 = vunpack.c.l.b16 %v701
    %v766 = vunpack.c.l.b16 %v702
    %v767 = vunpack.c.l.b16 %v703
    %v768 = vunpack.c.l.b16 %v704
    %v769 = vunpack.c.l.b16 %v705
    %v770 = vunpack.c.l.b16 %v706
    %v771 = vunpack.c.l.b16 %v707
    %v772 = vunpack.c.l.b16 %v708
    %v773 = vunpack.c.l.b16 %v709
    %v774 = vunpack.c.l.b16 %v710
    %v775 = vunpack.c.l.b16 %v711
    %v776 = vunpack.c.l.b16 %v712
    %v777 = vunpack.c.l.b16 %v713
    %v778 = vunpack.c.l.b16 %v714
    %v779 = vunpack.c.l.b16 %v715
    %v780 = vunpack.c.l.b16 %v716
    %v781 = vunpack.c.l.b16 %v717
    %v782 = vunpack.c.l.b16 %v718
    %v783 = vunpack.c.l.b16 %v719
    %v784 = vunpack.c.l.b16 %v720
    %v785 = vunpack.c.l.b16 %v721
    %v786 = vunpack.c.l.b16 %v722
    %v787 = vunpack.c.l.b16 %v723
    %v788 = vunpack.c.l.b16 %v724
    %v789 = vunpack.c.l.b16 %v725
    %v790 = vunpack.c.l.b16 %v726
    %v791 = vunpack.c.l.b16 %v727
    %v792 = vunpack.c.l.b16 %v728
    %v793 = vunpack.c.l.b16 %v729
    %v794 = vunpack.c.l.b16 %v730
    %v795 = vpack.c.b16 %v764, %v763
    %v796 = vpack.c.b16 %v766, %v765
    %v797 = vpack.c.b16 %v768, %v767
    %v798 = vpack.c.b16 %v770, %v769
    %v799 = vpack.c.b16 %v772, %v771
    %v800 = vpack.c.b16 %v774, %v773
    %v801 = vpack.c.b16 %v776, %v775
    %v802 = vpack.c.b16 %v778, %v777
    %v803 = vpack.c.b16 %v780, %v779
    %v804 = vpack.c.b16 %v782, %v781
    %v805 = vpack.c.b16 %v784, %v783
    %v806 = vpack.c.b16 %v786, %v785
    %v807 = vpack.c.b16 %v788, %v787
    %v808 = vpack.c.b16 %v790, %v789
    %v809 = vpack.c.b16 %v792, %v791
    %v810 = vpack.c.b16 %v794, %v793
    %827 = vmatprep.subr.bf16.mxu0 0
    %828 = vmatpush1.bf16.msra.mxu0 %v802
    %829 = vmatprep.subr.bf16.mxu0 0
    %830 = vmatpush1.bf16.msra.mxu0 %v801
    %831 = vmatprep.subr.bf16.mxu0 0
    %832 = vmatpush1.bf16.msra.mxu0 %v800
    %833 = vmatprep.subr.bf16.mxu0 0
    %834 = vmatpush1.bf16.msra.mxu0 %v799
    %835 = vmatprep.subr.bf16.mxu0 0
    %836 = vmatpush1.bf16.msra.mxu0 %v798
    %837 = vmatprep.subr.bf16.mxu0 0
    %838 = vmatpush1.bf16.msra.mxu0 %v797
    %839 = vmatprep.subr.bf16.mxu0 0
    %840 = vmatpush1.bf16.msra.mxu0 %v796
    %841 = vmatprep.subr.bf16.mxu0 0
    %842 = vmatpush1.bf16.msra.mxu0 %v795
    %843 = vmatprep.subr.bf16.mxu0 0
    %844 = vmatpush2.bf16.msra.mxu0 %v810
    %845 = vmatprep.subr.bf16.mxu0 0
    %846 = vmatpush2.bf16.msra.mxu0 %v809
    %847 = vmatprep.subr.bf16.mxu0 0
    %848 = vmatpush2.bf16.msra.mxu0 %v808
    %849 = vmatprep.subr.bf16.mxu0 0
    %850 = vmatpush2.bf16.msra.mxu0 %v807
    %851 = vmatprep.subr.bf16.mxu0 0
    %852 = vmatpush2.bf16.msra.mxu0 %v806
    %853 = vmatprep.subr.bf16.mxu0 0
    %854 = vmatpush2.bf16.msra.mxu0 %v805
    %855 = vmatprep.subr.bf16.mxu0 0
    %856 = vmatpush2.bf16.msra.mxu0 %v804
    %857 = vmatprep.subr.bf16.mxu0 0
    %858 = vmatpush2.bf16.msra.mxu0 %v803
    %859 = vmatprep.mubr.bf16.mxu0 %v690
    %860 = vmatmul.mubr.bf16.gmra.mxu0 %v689
    %v861 = vpop.f32.mrf.mxu0
    %v862 = vadd.f32 0.0, %v861
    %v863 = vpop.f32.mrf.mxu0
    %v864 = vpop.f32.mrf.mxu0
    %v865 = vadd.f32 0.0, %v864
    %v866 = vpop.f32.mrf.mxu0
    %867 = vmatprep.mubr.bf16.mxu0 %v692
    %868 = vmatmul.mubr.bf16.gmra.mxu0 %v691
    %v869 = vpop.f32.mrf.mxu0
    %v870 = vadd.f32 0.0, %v869
    %v871 = vpop.f32.mrf.mxu0
    %v872 = vpop.f32.mrf.mxu0
    %v873 = vadd.f32 0.0, %v872
    %v874 = vpop.f32.mrf.mxu0
    %875 = vmatprep.mubr.bf16.mxu0 %v694
    %876 = vmatmul.mubr.bf16.gmra.mxu0 %v693
    %v877 = vpop.f32.mrf.mxu0
    %v878 = vadd.f32 0.0, %v877
    %v879 = vpop.f32.mrf.mxu0
    %v880 = vpop.f32.mrf.mxu0
    %v881 = vadd.f32 0.0, %v880
    %v882 = vpop.f32.mrf.mxu0
    %883 = vmatprep.mubr.bf16.mxu0 %v696
    %884 = vmatmul.mubr.bf16.gmra.mxu0 %v695
    %v885 = vpop.f32.mrf.mxu0
    %v886 = vadd.f32 0.0, %v885
    %v887 = vpop.f32.mrf.mxu0
    %v888 = vpop.f32.mrf.mxu0
    %v889 = vadd.f32 0.0, %v888
    %v890 = vpop.f32.mrf.mxu0
    %891 = vmatprep.mubr.bf16.mxu0 %v698
    %892 = vmatmul.mubr.bf16.gmra.mxu0 %v697
    %v893 = vpop.f32.mrf.mxu0
    %v894 = vadd.f32 0.0, %v893
    %v895 = vpop.f32.mrf.mxu0
    %v896 = vpop.f32.mrf.mxu0
    %v897 = vadd.f32 0.0, %v896
    %v898 = vpop.f32.mrf.mxu0
    %899 = vdwg.mxu0
    %v900 = vadd.f32 %v679, %v862
    %v901 = vadd.f32 %v680, %v865
    %v902 = vadd.f32 %v681, %v870
    %v903 = vadd.f32 %v682, %v873
    %v904 = vadd.f32 %v683, %v878
    %v905 = vadd.f32 %v684, %v881
    %v906 = vadd.f32 %v685, %v886
    %v907 = vadd.f32 %v686, %v889
    %v908 = vadd.f32 %v687, %v894
    %v909 = vadd.f32 %v688, %v897
    %910 = vst [vmem:[#allocation2] sm:$0xff] %v900
    %911 = vst [vmem:[#allocation2 + $0x8] sm:$0xff] %v901
    %912 = vst [vmem:[#allocation2 + $0x10] sm:$0xff] %v902
    %913 = vst [vmem:[#allocation2 + $0x18] sm:$0xff] %v903
    %914 = vst [vmem:[#allocation2 + $0x20] sm:$0xff] %v904
    %915 = vst [vmem:[#allocation2 + $0x28] sm:$0xff] %v905
    %916 = vst [vmem:[#allocation2 + $0x30] sm:$0xff] %v906
    %917 = vst [vmem:[#allocation2 + $0x38] sm:$0xff] %v907
    %918 = vst [vmem:[#allocation2 + $0x40] sm:$0xff] %v908
    %919 = vst [vmem:[#allocation2 + $0x48] sm:$0xff] %v909
    // Predicated region
    $region50: #{tpu_custom_call.1} parent=1 // pred_check
      %p920 = pneg %p83
    $region51: #{tpu_custom_call.1} parent=1 // pred_check_branch
      %922 = sbr.rel (%p920) target = $region53
    $region52: #{tpu_custom_call.1} parent=1 // pred_region
      %v923 = vld [vmem:[#allocation2] sm:$0xff]
      %v924 = vld [vmem:[#allocation2 + $0x8] sm:$0xff]
      %v925 = vld [vmem:[#allocation2 + $0x10] sm:$0xff]
      %v926 = vld [vmem:[#allocation2 + $0x18] sm:$0xff]
      %v927 = vld [vmem:[#allocation2 + $0x20] sm:$0xff]
      %v928 = vld [vmem:[#allocation2 + $0x28] sm:$0xff]
      %v929 = vld [vmem:[#allocation2 + $0x30] sm:$0xff]
      %v930 = vld [vmem:[#allocation2 + $0x38] sm:$0xff]
      %v931 = vld [vmem:[#allocation2 + $0x40] sm:$0xff]
      %v932 = vld [vmem:[#allocation2 + $0x48] sm:$0xff]
      %v933 = vld [vmem:[%s6] sm:$0x1]
      %v935 = vlaneseq
      %v936 = vshrl.u32 %v935, 7
      %v937 = vsub.s32 0, %v936
      %v938 = vrot.slane %v933, %v937
      %v940 = vadd.f32 %v923, %v938
      %v941 = vadd.f32 %v924, %v938
      %v942 = vadd.f32 %v925, %v938
      %v943 = vadd.f32 %v926, %v938
      %v944 = vadd.f32 %v927, %v938
      %v945 = vadd.f32 %v928, %v938
      %v946 = vadd.f32 %v929, %v938
      %v947 = vadd.f32 %v930, %v938
      %v948 = vadd.f32 %v931, %v938
      %v949 = vadd.f32 %v932, %v938
      %950 = vst [vmem:[#allocation11] sm:$0xff] %v940
      %951 = vst [vmem:[#allocation11 + $0x8] sm:$0xff] %v941
      %952 = vst [vmem:[#allocation11 + $0x10] sm:$0xff] %v942
      %953 = vst [vmem:[#allocation11 + $0x18] sm:$0xff] %v943
      %954 = vst [vmem:[#allocation11 + $0x20] sm:$0xff] %v944
      %955 = vst [vmem:[#allocation11 + $0x28] sm:$0xff] %v945
      %956 = vst [vmem:[#allocation11 + $0x30] sm:$0xff] %v946
      %957 = vst [vmem:[#allocation11 + $0x38] sm:$0xff] %v947
      %958 = vst [vmem:[#allocation11 + $0x40] sm:$0xff] %v948
      %959 = vst [vmem:[#allocation11 + $0x48] sm:$0xff] %v949
    $region53: #{tpu_custom_call.1} parent=1 // pred_fallthru
      _
    // Predicated region
    $region54: #{tpu_custom_call.1} parent=1 // pred_check
      _
    $region55: #{tpu_custom_call.1} parent=1 // pred_check_branch
      %961 = sbr.rel (0) target = $region57
    $region56: #{tpu_custom_call.1} parent=1 // pred_region
      %s963 = ssub.s32 1280, 1280
      %964 = vsyncadd [#allocation5], %s963
      %s965 = sshll.u32 [#allocation11], 4
      %s966 = int_to_ptr.vmem [resolvable:$true] %s965
      %971 = dma.vmem_to_hbm [thread:$0]  %s966, 1280, %s7, [#allocation5], 128, 128, 8
    $region57: #{tpu_custom_call.1} parent=1 // pred_fallthru
      _
    // Predicated region
    $region58: #{tpu_custom_call.1} parent=1 // pred_check
      _
    $region59: #{tpu_custom_call.1} parent=1 // pred_check_branch
      %973 = sbr.rel (0) target = $region61
    $region60: #{tpu_custom_call.1} parent=1 // pred_region
      %974 = dma.done [#allocation5], 1280
    $region61: #{tpu_custom_call.1} parent=1 // pred_fallthru
      _
    %975 = vsyncpa [#allocation4], 1
    %976 = vsyncpa [#allocation7], 1
    %977 = vsyncpa [#allocation10], 1
    %978 = vsyncpa [#allocation5], 1

</llo_original>
